<compile_context>
chip_gen: v5e
topology: v5e:2x2
jax: 0.10.0
libtpu: 0.0.40
codegen_flags: <defaults>
</compile_context>

<pallas_src>
import functools

import jax
import jax.numpy as jnp
from jax.experimental import pallas as pl
from jax.experimental.pallas import tpu as pltpu


def _focal_loss_kernel(logits_ref, side_ref, out_ref, *, gamma, n_rows, n_cols,
                       block_n):
    logits = logits_ref[...].astype(jnp.float32)           # (tn, cp) f32
    tn, cp = logits.shape

    side = side_ref[...]                                   # (tn, 2) f32: [target, alpha_t]
    tgt = side[:, 0:1].astype(jnp.int32)                   # targets are small ints, exact in f32
    a_t = side[:, 1:2]                                     # per-sample class weight

    col = jax.lax.broadcasted_iota(jnp.int32, (tn, cp), 1)
    if n_cols < cp:                                        # static: class remainder only
        logits = jnp.where(col < n_cols, logits, -1e30)    # padded lanes never win max / lse

    # numerically stable log-sum-exp along the class (lane) axis
    m = jnp.max(logits, axis=-1, keepdims=True)            # (tn, 1)
    shifted = logits - m                                    # (tn, cp)
    lse = jnp.log(jnp.sum(jnp.exp(shifted), axis=-1, keepdims=True))

    # -log_softmax at the target class via where-select (no one-hot f32 temp)
    shifted_t = jnp.sum(jnp.where(col == tgt, shifted, 0.0), axis=-1, keepdims=True)
    nll = lse - shifted_t                                   # (tn, 1)

    ce = a_t * nll                   # F.cross_entropy(weight=alpha, reduction='none')
    p_t = jnp.exp(-ce)
    x = jnp.maximum(1.0 - p_t, 0.0)

    g = float(gamma)
    if g == int(g) and 0 <= int(g) <= 4:
        pw = jnp.ones_like(x)
        for _ in range(int(g)):                             # explicit multiplies, no pow
            pw = pw * x
    else:
        pw = x ** g

    loss = pw * ce                                          # (tn, 1)

    if n_rows % block_n != 0:                               # static: ragged last tile only
        row = pl.program_id(0) * block_n + jax.lax.broadcasted_iota(jnp.int32, (tn, 1), 0)
        loss = jnp.where(row < n_rows, loss, 0.0)           # select -> garbage rows add 0

    # per-tile partial sum, broadcast into a full (8,128)-aligned block
    out_ref[...] = jnp.broadcast_to(jnp.sum(loss), (1, 8, 128)).astype(jnp.float32)


def focal_loss(logits, targets, *, gamma=2.0, alpha=None, reduction="mean",
               block_rows=None):
    """Pallas TPU focal loss.  logits: (N, C) float; targets: (N,) int."""
    N, C = logits.shape
    itemsize = jnp.dtype(logits.dtype).itemsize
    sub = {4: 8, 2: 16, 1: 32}.get(itemsize, 8)             # sublane multiple per dtype

    # lane-aligned block width; the logits array itself is NOT padded.
    C_pad = pl.cdiv(C, 128) * 128

    try:
        vmem_cap = int(pltpu.get_tpu_info().vmem_capacity_bytes)
    except Exception:                                        # pragma: no cover
        vmem_cap = 64 << 20                                  # conservative (v7x)

    # VMEM bytes per batch row: double-buffered input tile + ~4 f32 in-kernel
    # temporaries + lane-padded (block_n, 2) side input (2 buffers).
    bytes_per_row = C_pad * (2 * itemsize + 4 * 4) + 2 * 128 * 4
    work_budget = min(int(vmem_cap * 0.4), 56 << 20)         # ~25 MiB on v7x, ~51 MiB on v5e/v6e
    max_rows = max(sub, (work_budget // bytes_per_row) // sub * sub)

    # 4-8 MiB of logits per tile keeps the ~0.35 us per-grid-step overhead amortized.
    target_tile_bytes = (8 << 20) if vmem_cap >= (96 << 20) else (4 << 20)
    block_n = max(sub, (target_tile_bytes // (C_pad * itemsize)) // sub * sub)
    if block_rows is not None:
        block_n = max(sub, (int(block_rows) // sub) * sub)
    block_n = min(block_n, max_rows)
    block_n = min(block_n, pl.cdiv(N, sub) * sub)            # never larger than the batch
    if N >= 2 * sub:                                         # >= 2 tiles so both v7x TCs get work
        block_n = min(block_n, pl.cdiv(pl.cdiv(N, 2), sub) * sub)
    block_n = max(sub, (block_n // sub) * sub)

    num_tiles = pl.cdiv(N, block_n)

    # --- wrapper-side prep: O(N) only (no pad of the big logits tensor) ---
    targets_i = targets.astype(jnp.int32)
    targets_f = targets_i.astype(jnp.float32)                # exact for any realistic C
    if alpha is None:
        alpha_t = jnp.ones((N,), jnp.float32)
    else:
        alpha_t = jnp.asarray(alpha, jnp.float32)[targets_i] # per-sample class weight
    side = jnp.stack([targets_f, alpha_t], axis=1)           # (N, 2) f32, one side DMA per tile

    # explicit scoped-VMEM limit with headroom (input double-buffer + f32 temps
    # + lane-padded side buffers + outputs)
    needed = (2 * block_n * C_pad * itemsize
              + 4 * block_n * C_pad * 4
              + 2 * block_n * 128 * 4
              + (2 << 20))
    vmem_limit = int(min(max(32 << 20, needed + (4 << 20)), vmem_cap - (8 << 20)))

    kernel = functools.partial(_focal_loss_kernel, gamma=float(gamma),
                               n_rows=N, n_cols=C, block_n=block_n)

    partials = pl.pallas_call(
        kernel,
        out_shape=jax.ShapeDtypeStruct((num_tiles, 8, 128), jnp.float32),
        grid_spec=pltpu.PrefetchScalarGridSpec(
            num_scalar_prefetch=0,
            grid=(num_tiles,),
            in_specs=[
                pl.BlockSpec((block_n, C_pad), lambda i: (i, 0)),   # logits tile (ragged edges masked in-kernel)
                pl.BlockSpec((block_n, 2), lambda i: (i, 0)),       # packed [target, alpha_t]
            ],
            out_specs=pl.BlockSpec((1, 8, 128), lambda i: (i, 0, 0)),  # per-tile partial sum
        ),
        compiler_params=pltpu.CompilerParams(
            # independent tiles -> megacore-shardable (use pltpu.CORE_PARALLEL if
            # profiling shows v7x runs this on a single TensorCore)
            dimension_semantics=("parallel",),
            vmem_limit_bytes=vmem_limit,
        ),
    )(logits, side)

    total = jnp.sum(partials[:, 0, 0])
    if reduction == "mean":
        return total / jnp.float32(N)     # module does loss.mean() over N samples
    return total


def _focal_loss_ref(logits, targets, gamma=2.0, alpha=None, reduction="mean"):
    logp = jax.nn.log_softmax(logits.astype(jnp.float32), axis=-1)
    nll = -jnp.take_along_axis(logp, targets[:, None].astype(jnp.int32), axis=-1)[:, 0]
    if alpha is not None:
        nll = nll * jnp.asarray(alpha, jnp.float32)[targets]
    ce = nll
    p_t = jnp.exp(-ce)
    loss = (1.0 - p_t) ** gamma * ce
    return loss.mean() if reduction == "mean" else loss.sum()


if __name__ == "__main__":
    key = jax.random.PRNGKey(0)
    k1, k2, k3 = jax.random.split(key, 3)

    # case 1: module defaults (alpha=None, mean); exercises multi-tile partial sums
    # and the in-kernel class-remainder mask (C=16 < 128).
    N, C = 16, 16
    logits = jax.random.normal(k1, (N, C), dtype=jnp.float32)
    targets = jax.random.randint(k2, (N,), 0, C, dtype=jnp.int32)
    out = jax.block_until_ready(
        focal_loss(logits, targets, gamma=2.0, alpha=None, reduction="mean"))
    ref = _focal_loss_ref(logits, targets, 2.0, None, "mean")
    assert jnp.allclose(out, ref, rtol=1e-5, atol=1e-6), (out, ref)

    # case 2: ragged batch (N=13), non-aligned classes, class weights, sum reduction;
    # exercises the in-kernel row mask for the partial last tile.
    N2, C2 = 13, 10
    logits2 = jax.random.normal(k3, (N2, C2), dtype=jnp.float32)
    targets2 = jnp.arange(N2, dtype=jnp.int32) % C2
    alpha2 = jnp.linspace(0.5, 1.5, C2, dtype=jnp.float32)
    out2 = jax.block_until_ready(
        focal_loss(logits2, targets2, gamma=2.0, alpha=alpha2, reduction="sum"))
    ref2 = _focal_loss_ref(logits2, targets2, 2.0, alpha2, "sum")
    assert jnp.allclose(out2, ref2, rtol=1e-5, atol=1e-5), (out2, ref2)

    print("KERNEL_OK")
</pallas_src>

<mosaic_0001>
module attributes {stable_mosaic.version = 11 : i64} {
  func.func @_focal_loss_kernel(%arg0: i32, %arg1: memref<8x128xf32, #tpu.memory_space<vmem>>, %arg2: memref<8x2xf32, #tpu.memory_space<vmem>>, %arg3: memref<1x8x128xf32, #tpu.memory_space<vmem>>) attributes {dimension_semantics = [#tpu.dimension_semantics<parallel>], iteration_bounds = array<i64: 2>, scalar_prefetch = 0 : i64, scratch_operands = 0 : i64, tpu.core_type = #tpu.core_type<tc>, window_params = [{transform_indices = @transform_0, window_bounds = array<i64: 8, 128>}, {transform_indices = @transform_1, window_bounds = array<i64: 8, 2>}, {transform_indices = @transform_2, window_bounds = array<i64: 1, 8, 128>}]} {
    %c0 = arith.constant 0 : index
    %c0_0 = arith.constant 0 : index
    %0 = vector.load %arg1[%c0, %c0_0] : memref<8x128xf32, #tpu.memory_space<vmem>>, vector<8x128xf32>
    %c0_1 = arith.constant 0 : index
    %c0_2 = arith.constant 0 : index
    %1 = vector.load %arg2[%c0_1, %c0_2] : memref<8x2xf32, #tpu.memory_space<vmem>>, vector<8x2xf32>
    %2 = vector.extract_strided_slice %1 {offsets = [0, 0], sizes = [8, 1], strides = [1, 1]} : vector<8x2xf32> to vector<8x1xf32>
    %3 = arith.fptosi %2 : vector<8x1xf32> to vector<8x1xi32>
    %4 = vector.extract_strided_slice %1 {offsets = [0, 1], sizes = [8, 1], strides = [1, 1]} : vector<8x2xf32> to vector<8x1xf32>
    %5 = tpu.iota {dimensions = array<i32: 1>} : vector<8x128xi32>
    %c16_i32 = arith.constant 16 : i32
    %6 = vector.broadcast %c16_i32 : i32 to vector<8x128xi32>
    %7 = arith.cmpi slt, %5, %6 : vector<8x128xi32>
    %cst = arith.constant -1.000000e+30 : f32
    %8 = vector.broadcast %cst : f32 to vector<8x128xf32>
    %9 = arith.select %7, %0, %8 : vector<8x128xi1>, vector<8x128xf32>
    %cst_3 = arith.constant dense<0xFF800000> : vector<8xf32>
    %10 = vector.multi_reduction <maximumf>, %9, %cst_3 [1] : vector<8x128xf32> to vector<8xf32>
    %11 = vector.shape_cast %10 : vector<8xf32> to vector<8x1xf32>
    %12 = vector.broadcast %11 : vector<8x1xf32> to vector<8x128xf32>
    %13 = arith.subf %9, %12 : vector<8x128xf32>
    %14 = math.exp %13 : vector<8x128xf32>
    %cst_4 = arith.constant dense<0.000000e+00> : vector<8xf32>
    %15 = vector.multi_reduction <add>, %14, %cst_4 [1] : vector<8x128xf32> to vector<8xf32>
    %16 = vector.shape_cast %15 : vector<8xf32> to vector<8x1xf32>
    %17 = math.log %16 : vector<8x1xf32>
    %18 = vector.broadcast %3 : vector<8x1xi32> to vector<8x128xi32>
    %19 = arith.cmpi eq, %5, %18 : vector<8x128xi32>
    %cst_5 = arith.constant 0.000000e+00 : f32
    %20 = vector.broadcast %cst_5 : f32 to vector<8x128xf32>
    %21 = arith.select %19, %13, %20 : vector<8x128xi1>, vector<8x128xf32>
    %cst_6 = arith.constant dense<0.000000e+00> : vector<8xf32>
    %22 = vector.multi_reduction <add>, %21, %cst_6 [1] : vector<8x128xf32> to vector<8xf32>
    %23 = vector.shape_cast %22 : vector<8xf32> to vector<8x1xf32>
    %24 = arith.subf %17, %23 : vector<8x1xf32>
    %25 = arith.mulf %4, %24 : vector<8x1xf32>
    %cst_7 = arith.constant 0.000000e+00 : f32
    %26 = vector.broadcast %cst_7 : f32 to vector<8x1xf32>
    %27 = arith.subf %26, %25 : vector<8x1xf32>
    %28 = math.exp %27 : vector<8x1xf32>
    %cst_8 = arith.constant 1.000000e+00 : f32
    %29 = vector.broadcast %cst_8 : f32 to vector<8x1xf32>
    %30 = arith.subf %29, %28 : vector<8x1xf32>
    %cst_9 = arith.constant 0.000000e+00 : f32
    %31 = vector.broadcast %cst_9 : f32 to vector<8x1xf32>
    %32 = arith.maximumf %30, %31 : vector<8x1xf32>
    %cst_10 = arith.constant 1.000000e+00 : f32
    %33 = vector.broadcast %cst_10 : f32 to vector<8x1xf32>
    %34 = arith.mulf %33, %32 : vector<8x1xf32>
    %35 = arith.mulf %34, %32 : vector<8x1xf32>
    %36 = arith.mulf %35, %25 : vector<8x1xf32>
    %37 = vector.shape_cast %36 : vector<8x1xf32> to vector<1x8x1xf32>
    %cst_11 = arith.constant dense<0.000000e+00> : vector<1xf32>
    %38 = vector.multi_reduction <add>, %37, %cst_11 [1, 2] : vector<1x8x1xf32> to vector<1xf32>
    %39 = vector.shape_cast %38 : vector<1xf32> to vector<1x1x1xf32>
    %40 = vector.extract %39[0, 0, 0] : f32 from vector<1x1x1xf32>
    %41 = vector.broadcast %40 : f32 to vector<1x8x128xf32>
    %c0_12 = arith.constant 0 : index
    %c0_13 = arith.constant 0 : index
    %c0_14 = arith.constant 0 : index
    %42 = vector.load %arg3[%c0_12, %c0_13, %c0_14] : memref<1x8x128xf32, #tpu.memory_space<vmem>>, vector<1x8x128xf32>
    tpu.vector_store %arg3[%c0_12, %c0_13, %c0_14], %41 {strides = array<i32>} : memref<1x8x128xf32, #tpu.memory_space<vmem>>, vector<1x8x128xf32>,
    return
  }
  func.func @transform_0(%arg0: i32) -> (i32, i32) {
    %c0_i32 = arith.constant 0 : i32
    %c0_i32_0 = arith.constant 0 : i32
    return %arg0, %c0_i32 : i32, i32
  }
  func.func @transform_1(%arg0: i32) -> (i32, i32) {
    %c0_i32 = arith.constant 0 : i32
    %c0_i32_0 = arith.constant 0 : i32
    return %arg0, %c0_i32 : i32, i32
  }
  func.func @transform_2(%arg0: i32) -> (i32, i32, i32) {
    %c0_i32 = arith.constant 0 : i32
    %c0_i32_0 = arith.constant 0 : i32
    %c0_i32_1 = arith.constant 0 : i32
    return %arg0, %c0_i32, %c0_i32_0 : i32, i32, i32
  }
}

</mosaic_0001>

<llo_original>
// kernel: tpu_custom_call.1
$region0: #{tpu_custom_call.1}
  #allocation0 [shape = 'u32[]', space=smem, size = 0x4, offset = 0x4, fixed_abs, tag = 'smem constant byte address 0x4 - core index']
  #allocation1 [shape = 'u32[72,128]{1,0:T(1,128)}', space=vmem, size = 0x9000, scoped, tag = 'internal scratch']
  %s0 = inlined_call_operand.vmem [shape: f32[16,16], index: 0, kind: input, shape index: {}]
  %s1 = inlined_call_operand.vmem [shape: f32[16,2], index: 1, kind: input, shape index: {}]
  %s2 = inlined_call_operand.hbm [shape: f32[2,8,128], index: 2, kind: output, shape index: {}]
  %s3 = sld [smem:[#allocation0]]
  $region41: #{tpu_custom_call.1} parent=0
    _
  %s5 = ssub.s32 1, %s3
  %s6 = scalar_select 0, %s5, %s3
  $region1: #{tpu_custom_call.1} parent=0
    #allocation2 [shape = 'u8[8192]{0}', space=vmem, size = 0x2000, scoped, tag = 'output window, operand 0']
    #allocation3 [shape = 's32[2]{0}', space=sflag, size = 0x8, scoped, tag = 'scoped memory for tpu_custom_call.1']
    %7 = vsyncpa [#allocation3], 0
    %s8 = scalar_lea.sflag [#allocation3], 1
    %9 = vsyncpa %s8, 0
    loop: start=0, step=1, limit=4
    $region2: #{tpu_custom_call.1} parent=1 // loop_pre_header
      _
    $region3: #{tpu_custom_call.1} parent=1 // loop_header
      %s11 = sphi 0, %s15
      %p12 = scmp.ge.s32.totalorder %s11, 4
      %s21 = sphi 0, %s23
      %s24 = sphi 0, %s21
      %s25 = sphi 0, %s24
      %s41 = sphi 0, %s25
      %s47 = sphi 0, %s49
      %s50 = sphi 0, %s47
      %s51 = sphi 0, %s50
      %s67 = sphi 0, %s51
      %s73 = sphi 0, %s75
      %s76 = sphi 0, %s73
      %s77 = sphi 0, %s76
      %s93 = sphi 0, %s77
    $region4: #{tpu_custom_call.1} parent=1 // loop_header_branch
      %14 = sbr.rel (%p12) target = $region8
    $region5: #{tpu_custom_call.1} parent=1 // loop_body
      %s16 = ssub.s32 %s11, 1
      %s17 = ssub.s32 %s11, 2
      %s18 = sadd.s32 %s11, 1
      %s19 = ssub.s32 %s11, %s18
      %p20 = scmp.eq.s32.totalorder %s19, 0
      %s22 = sadd.s32 %s21, 1
      %s23 = scalar_select %p20, %s21, %s22
      %p26 = pneg %p20
      %p27 = scmp.eq.s32.totalorder %s11, 1
      %p28 = por %p26, %p27
      %p29 = scmp.ne.s32.totalorder %s21, %s24
      %p30 = scmp.eq.s32.totalorder %s11, 0
      %p31 = por %p29, %p30
      %p32 = scmp.ne.s32.totalorder %s21, %s24
      %p33 = scmp.eq.s32.totalorder %s16, 1
      %p34 = por %p32, %p33
      %p35 = scmp.ne.s32.totalorder %s24, %s25
      %p36 = scmp.eq.s32.totalorder %s16, 0
      %p37 = por %p35, %p36
      %p38 = scmp.ne.s32.totalorder %s24, %s25
      %p39 = scmp.eq.s32.totalorder %s17, 1
      %p40 = por %p38, %p39
      %p42 = scmp.ne.s32.totalorder %s25, %s41
      %p43 = scmp.eq.s32.totalorder %s17, 0
      %p44 = por %p42, %p43
      %s45 = ssub.s32 %s11, %s18
      %p46 = scmp.eq.s32.totalorder %s45, 0
      %s48 = sadd.s32 %s47, 1
      %s49 = scalar_select %p46, %s47, %s48
      %p52 = pneg %p46
      %p53 = scmp.eq.s32.totalorder %s11, 1
      %p54 = por %p52, %p53
      %p55 = scmp.ne.s32.totalorder %s47, %s50
      %p56 = scmp.eq.s32.totalorder %s11, 0
      %p57 = por %p55, %p56
      %p58 = scmp.ne.s32.totalorder %s47, %s50
      %p59 = scmp.eq.s32.totalorder %s16, 1
      %p60 = por %p58, %p59
      %p61 = scmp.ne.s32.totalorder %s50, %s51
      %p62 = scmp.eq.s32.totalorder %s16, 0
      %p63 = por %p61, %p62
      %p64 = scmp.ne.s32.totalorder %s50, %s51
      %p65 = scmp.eq.s32.totalorder %s17, 1
      %p66 = por %p64, %p65
      %p68 = scmp.ne.s32.totalorder %s51, %s67
      %p69 = scmp.eq.s32.totalorder %s17, 0
      %p70 = por %p68, %p69
      %s71 = ssub.s32 %s11, %s18
      %p72 = scmp.eq.s32.totalorder %s71, 0
      %s74 = sadd.s32 %s73, 1
      %s75 = scalar_select %p72, %s73, %s74
      %p78 = pneg %p72
      %p79 = scmp.eq.s32.totalorder %s11, 1
      %p80 = por %p78, %p79
      %p81 = scmp.ne.s32.totalorder %s73, %s76
      %p82 = scmp.eq.s32.totalorder %s11, 0
      %p83 = por %p81, %p82
      %p84 = scmp.ne.s32.totalorder %s73, %s76
      %p85 = scmp.eq.s32.totalorder %s16, 1
      %p86 = por %p84, %p85
      %p87 = scmp.ne.s32.totalorder %s76, %s77
      %p88 = scmp.eq.s32.totalorder %s16, 0
      %p89 = por %p87, %p88
      %p90 = scmp.ne.s32.totalorder %s76, %s77
      %p91 = scmp.eq.s32.totalorder %s17, 1
      %p92 = por %p90, %p91
      %p94 = scmp.ne.s32.totalorder %s77, %s93
      %p95 = scmp.eq.s32.totalorder %s17, 0
      %p96 = por %p94, %p95
      %p97 = scmp.le.s32.totalorder 1, %s11
      %p98 = scmp.lt.s32.totalorder %s11, 3
      %p99 = pnand %p97, %p98
      %p100 = pneg %p99
      // Predicated region
      $region9: #{tpu_custom_call.1} parent=5 // pred_check
        _
      $region10: #{tpu_custom_call.1} parent=5 // pred_check_branch
        %102 = sbr.rel (%p99) target = $region12
      $region11: #{tpu_custom_call.1} parent=5 // pred_region
        %s103 = ssub.s32 %s11, 1
      $region12: #{tpu_custom_call.1} parent=5 // pred_fallthru
        _
      %p104 = scmp.lt.s32.totalorder %s11, 2
      // Predicated region
      $region13: #{tpu_custom_call.1} parent=5 // pred_check
        %p105 = pneg %p104
      $region14: #{tpu_custom_call.1} parent=5 // pred_check_branch
        %107 = sbr.rel (%p105) target = $region16
      $region15: #{tpu_custom_call.1} parent=5 // pred_region
        // Predicated region
        $region17: #{tpu_custom_call.1} parent=15 // pred_check
          %p108 = pneg %p31
        $region18: #{tpu_custom_call.1} parent=15 // pred_check_branch
          %110 = sbr.rel (%p108) target = $region20
        $region19: #{tpu_custom_call.1} parent=15 // pred_region
          %p111 = scmp.lt.s32.totalorder %s11, 1
          %s112 = scalar_select %p111, %s11, 1
          %s113 = smul.addr %s112, 8
          %s114 = scalar_lea.vmem %s0, %s113
        $region20: #{tpu_custom_call.1} parent=15 // pred_fallthru
          _
        // Predicated region
        $region21: #{tpu_custom_call.1} parent=15 // pred_check
          %p115 = pneg %p57
        $region22: #{tpu_custom_call.1} parent=15 // pred_check_branch
          %117 = sbr.rel (%p115) target = $region24
        $region23: #{tpu_custom_call.1} parent=15 // pred_region
          %p118 = scmp.lt.s32.totalorder %s11, 1
          %s119 = scalar_select %p118, %s11, 1
          %s120 = smul.addr %s119, 8
          %s121 = scalar_lea.vmem %s1, %s120
        $region24: #{tpu_custom_call.1} parent=15 // pred_fallthru
          _
      $region16: #{tpu_custom_call.1} parent=5 // pred_fallthru
        _
      %p122 = scmp.le.s32.totalorder 1, %s11
      %p123 = scmp.lt.s32.totalorder %s11, 3
      %p124 = pnand %p122, %p123
      %p125 = pneg %p124
      // Predicated region
      $region25: #{tpu_custom_call.1} parent=5 // pred_check
        _
      $region26: #{tpu_custom_call.1} parent=5 // pred_check_branch
        %127 = sbr.rel (%p124) target = $region28
      $region27: #{tpu_custom_call.1} parent=5 // pred_region
        %s128 = ssub.s32 %s11, 1
        %p129 = scmp.lt.s32.totalorder %s16, 1
        %s130 = scalar_select %p129, %s16, 1
        %s131 = smul.addr %s130, 8
        %s132 = scalar_lea.vmem %s0, %s131
        %p133 = pneg %p37
        %p134 = pneg %p34
        %p135 = scmp.lt.s32.totalorder %s16, 1
        %s136 = scalar_select %p135, %s16, 1
        %s137 = smul.addr %s136, 8
        %s138 = scalar_lea.vmem %s1, %s137
        %p139 = pneg %p63
        %p140 = pneg %p60
        %p141 = pneg %p89
        %p142 = pneg %p86
        %s143 = sand.u32 %s76, 1
        %s144 = scalar_lea.sflag [#allocation3], %s143
        %s145 = sand.u32 %s76, 1
        %s146 = smul.addr %s145, 8
        %s147 = scalar_lea.vmem [#allocation2], %s146
        %p148 = scmp.lt.s32.totalorder %s16, 1
        %s149 = scalar_select %p148, %s16, 1
        %s150 = smul.addr %s149, 8
        %s151 = scalar_lea.vmem %s0, %s150
        %p152 = scmp.lt.s32.totalorder %s16, 1
        %s153 = scalar_select %p152, %s16, 1
        %s154 = smul.addr %s153, 8
        %s155 = scalar_lea.vmem %s1, %s154
        %v156 = vld [vmem:[%s151] sm:$0xff]
        %v157 = vld [vmem:[%s155] sm:$0xff]
        %v158 = vcvt.f32.s32.to.zero.pseudo %v157
        %v159 = vlaneseq
        %v160 = vand.u32 %v159, 127
        %vm161 = vcmp.lt.s32.totalorder %v160, 16
        %v162 = vsel %vm161, %v156, -1e+30
        %163 = vmax.xlane.f32.xlu0 %v162
        %v164 = vpop.xlane.xlu0 %163
        %v165 = vsub.f32 %v162, %v164
        %v166 = vmul.f32 %v165, 1.442695
        %v167 = vpow.pop %v166
        %168 = vadd.xlane.f32.xlu0 %v167
        %v169 = vpop.xlane.xlu0 %168
        %v170 = vlog2.pop %v169
        %v171 = vmul.f32 %v170, 0.6931472
        %172 = vset.pattern.permute.xlu0 0
        %173 = vperm.xlu0 %172, %v158
        %v174 = vpop.permute.xlu0 %173
        %vm175 = vcmp.eq.s32.totalorder %v160, %v174
        %v176 = vsel %vm175, %v165, 0.0
        %177 = vadd.xlane.f32.xlu0 %v176
        %v178 = vpop.xlane.xlu0 %177
        %v179 = vsub.f32 %v171, %v178
        %v180 = vmul.f32 %v157, %v179
        %v181 = vsub.f32 0.0, %v180
        %v182 = vmul.f32 %v181, 1.442695
        %v183 = vpow.pop %v182
        %v184 = vsub.f32 1.0, %v183
        %v185 = vmax.f32 %v184, 0.0
        %v186 = vmul.f32 %v185, %v185
        %v187 = vmul.f32 %v186, %v180
        %189 = vrot.lane.b32.xlu0 %v187, 127
        %v190 = vpop.permute.xlu0 %189
        %vm192 = vcmask 7168
        %v193 = vsel %vm192, %v190, 0.0
        %194 = vadd.xlane.f32.xlu0 %v193
        %v195 = vpop.xlane.xlu0 %194
        %v196 = vrot.slane %v195, 4
        %v197 = vadd.f32 %v195, %v196
        %v198 = vrot.slane %v197, 2
        %v199 = vadd.f32 %v197, %v198
        %v200 = vrot.slane %v199, 1
        %v201 = vadd.f32 %v199, %v200
        %s202 = vtos %v201
        %v203 = vstv %s202
        %204 = vst [vmem:[%s147] sm:$0xff] %v203
        %s205 = sand.u32 %s76, 1
        %s206 = scalar_lea.sflag [#allocation3], %s205
        %s207 = sand.u32 %s76, 1
        %s208 = smul.addr %s207, 8
        %s209 = scalar_lea.vmem [#allocation2], %s208
        // Predicated region
        $region29: #{tpu_custom_call.1} parent=27 // pred_check
          %p210 = pneg %p86
        $region30: #{tpu_custom_call.1} parent=27 // pred_check_branch
          %212 = sbr.rel (%p210) target = $region32
        $region31: #{tpu_custom_call.1} parent=27 // pred_region
          %214 = vsyncadd %s206, 0
          %s215 = smul.addr %s16, 8
          %s216 = scalar_lea.hbm %s2, %s215
          %s218 = sshll.u32 %s209, 4
          %s219 = int_to_ptr.vmem [resolvable:$true] %s218
          %s220 = sshll.u32 %s216, 4
          %s221 = int_to_ptr.hbm [resolvable:$true] %s220
          %223 = dma.vmem_to_hbm [thread:$0]  %s219, 128, %s221, %s206
        $region32: #{tpu_custom_call.1} parent=27 // pred_fallthru
          _
      $region28: #{tpu_custom_call.1} parent=5 // pred_fallthru
        _
      %p224 = scmp.le.s32.totalorder 2, %s11
      // Predicated region
      $region33: #{tpu_custom_call.1} parent=5 // pred_check
        %p225 = pneg %p224
      $region34: #{tpu_custom_call.1} parent=5 // pred_check_branch
        %227 = sbr.rel (%p225) target = $region36
      $region35: #{tpu_custom_call.1} parent=5 // pred_region
        %s228 = ssub.s32 %s11, 2
        // Predicated region
        $region37: #{tpu_custom_call.1} parent=35 // pred_check
          %p229 = pneg %p92
        $region38: #{tpu_custom_call.1} parent=35 // pred_check_branch
          %231 = sbr.rel (%p229) target = $region40
        $region39: #{tpu_custom_call.1} parent=35 // pred_region
          %s232 = sand.u32 %s77, 1
          %s233 = scalar_lea.sflag [#allocation3], %s232
          %s234 = sand.u32 %s77, 1
          %s235 = smul.addr %s234, 8
          %s236 = scalar_lea.vmem [#allocation2], %s235
          %238 = dma.done %s233, 128
        $region40: #{tpu_custom_call.1} parent=35 // pred_fallthru
          _
      $region36: #{tpu_custom_call.1} parent=5 // pred_fallthru
        _
    $region6: #{tpu_custom_call.1} parent=1 // loop_footer
      %s15 = sadd.s32 1, %s11
    $region7: #{tpu_custom_call.1} parent=1 // loop_footer_branch
      %10 = sbr.rel target = $region3
    $region8: #{tpu_custom_call.1} parent=1 // loop_exit
      _
    %239 = vsyncpa [#allocation3], 1
    %s240 = scalar_lea.sflag [#allocation3], 1
    %241 = vsyncpa %s240, 1

</llo_original>
